<compile_context>
chip_gen: v6e
topology: v6e:2x2x1
jax: 0.10.0
libtpu: 0.0.40
codegen_flags: <defaults>
</compile_context>

<pallas_src>
import functools

import jax
import jax.numpy as jnp
from jax import lax
from jax.experimental import pallas as pl
from jax.experimental.pallas import tpu as pltpu


def _prompt_kernel(label_ref, cluster_ref,               # SMEM scalar prefetch
                   prefix_ref, suffix_ref, cls_param_ref,
                   out_ref, *, bb, num_class):
    """Assemble up to `bb` prompt rows per grid step.

    prefix_ref    : (2, n_prefix, D)  VMEM   [0]=normal, [1]=clustered
    suffix_ref    : (2, n_suffix, D)  VMEM
    cls_param_ref : (num_class, n_cls, D) VMEM (whole table, resident)
    out_ref       : (bb, T, D) VMEM
    """
    base = pl.program_id(0) * bb

    # Hoist the small prefix variants out of the per-row loop (loop-invariant,
    # ~1-4 vregs each at real shapes). Suffix variants stay as per-row dynamic
    # loads: hoisting both would need ~72 vregs at ctx_dim=512 and spill.
    pre0 = prefix_ref[0]              # (n_prefix, D)
    pre1 = prefix_ref[1]
    n_prefix = pre0.shape[0]
    n_cls = cls_param_ref.shape[1]

    def body(i, carry):
        row = base + i
        # NOTE: out-of-range labels are clamped (the PyTorch module would raise
        # on an OOB index). Padded tail rows read label 0 / cluster 0 and are
        # discarded by the clipped partial-block writeback.
        lbl = jnp.clip(label_ref[row], 0, num_class - 1)
        use_cluster = cluster_ref[row] != 0
        pre = jnp.where(use_cluster, pre1, pre0)           # (n_prefix, D)
        suf = suffix_ref[jnp.where(use_cluster, 1, 0)]     # (n_suffix, D)
        cls = cls_param_ref[lbl]                           # (n_cls, D) gather
        # Three direct sub-slice stores: no full (T, D) tile live in vregs.
        out_ref[i, 0:n_prefix, :] = pre.astype(out_ref.dtype)
        out_ref[i, n_prefix:n_prefix + n_cls, :] = cls.astype(out_ref.dtype)
        out_ref[i, n_prefix + n_cls:, :] = suf.astype(out_ref.dtype)
        return carry

    # Capped unroll bounds live ranges / vreg pressure at real shapes.
    lax.fori_loop(0, bb, body, 0, unroll=min(bb, 4))


def prompt_learner_cluster_forward(label, cluster, cls_ctx_param,
                                   token_prefix, token_suffix,
                                   token_prefix_cluster, token_suffix_cluster,
                                   *, rows_per_step=None,
                                   target_block_bytes=2 << 20):
    """label: (B,) int; cluster: (B,) int/bool (0/1) or None.
    cls_ctx_param: (num_class, n_cls, D)
    token_prefix / token_prefix_cluster: (1, n_prefix, D)
    token_suffix / token_suffix_cluster: (1, n_suffix, D)
    returns prompts: (B, n_prefix + n_cls + n_suffix, D)
    """
    B = int(label.shape[0])
    num_class, n_cls, D = cls_ctx_param.shape
    n_prefix = token_prefix.shape[1]
    n_suffix = token_suffix.shape[1]
    T = n_prefix + n_cls + n_suffix

    # torch.cat promotes dtypes; match that instead of silently downcasting the
    # token-embedding buffers to the learned-ctx dtype.
    out_dtype = jnp.result_type(cls_ctx_param.dtype, token_prefix.dtype,
                                token_suffix.dtype, token_prefix_cluster.dtype,
                                token_suffix_cluster.dtype)
    itemsize = jnp.dtype(out_dtype).itemsize

    cls_table = cls_ctx_param.astype(out_dtype)
    # Stack normal / clustered variants so the per-row choice is a cheap
    # first-axis index / scalar select inside the kernel.
    prefix_stacked = jnp.concatenate(
        [token_prefix, token_prefix_cluster], axis=0).astype(out_dtype)
    suffix_stacked = jnp.concatenate(
        [token_suffix, token_suffix_cluster], axis=0).astype(out_dtype)

    # --- rows per grid step: target ~2 MiB output blocks (HBM-bound), but keep
    # at least 2 grid blocks so both v7x TensorCores can split the batch.
    row_bytes = T * D * itemsize
    if rows_per_step is None:
        bb = max(8, target_block_bytes // max(row_bytes, 1))
    else:
        bb = int(rows_per_step)
    bb = max(1, min(bb, B))
    if B >= 2:
        bb = min(bb, -(-B // 2))          # ceil(B/2) -> >= 2 blocks
    n_blocks = pl.cdiv(B, bb)

    # Pad only the tiny SMEM scalar arrays so in-kernel reads on the partial
    # last block stay in bounds; the (B, T, D) output itself is NOT padded --
    # Pallas clips the partial-block writeback (no pad-then-slice HBM copy).
    Bp = n_blocks * bb
    label_i = label.astype(jnp.int32)
    cluster_i = (jnp.zeros_like(label_i) if cluster is None
                 else cluster.astype(jnp.int32))
    if Bp != B:
        label_i = jnp.pad(label_i, (0, Bp - B))
        cluster_i = jnp.pad(cluster_i, (0, Bp - B))

    kernel = functools.partial(_prompt_kernel, bb=bb, num_class=num_class)

    # --- VMEM ceiling from the actual part (v7x has 64 MiB/core, not 128).
    try:
        vmem_cap = int(pltpu.get_tpu_info().vmem_capacity_bytes)
    except Exception:
        vmem_cap = 64 << 20               # conservative fallback (v7x size)
    vmem_ceiling = max(16 << 20, (vmem_cap * 3) // 4)

    out_shape = jax.ShapeDtypeStruct((B, T, D), out_dtype)
    bytes_accessed = int(itemsize * (B * T * D + cls_table.size
                                     + prefix_stacked.size
                                     + suffix_stacked.size) + 8 * Bp)
    cost = pl.CostEstimate(flops=0, transcendentals=0,
                           bytes_accessed=bytes_accessed)

    def _run(single_buffer_constants):
        # Constant inputs have a constant index_map -> no "next block" exists,
        # single buffering halves their resident VMEM footprint.
        const_kw = ({"pipeline_mode": pl.Buffered(1)}
                    if single_buffer_constants else {})
        const_bufs = 1 if single_buffer_constants else 2
        vmem_bytes = itemsize * (
            const_bufs * (cls_table.size + prefix_stacked.size
                          + suffix_stacked.size)
            + 2 * bb * T * D) + (2 << 20)
        vmem_limit = int(min(max(vmem_bytes, 16 << 20), vmem_ceiling))

        grid_spec = pltpu.PrefetchScalarGridSpec(
            num_scalar_prefetch=2,            # label, cluster -> SMEM
            grid=(n_blocks,),
            in_specs=[
                pl.BlockSpec((2, n_prefix, D),
                             lambda b, lbl, clu: (0, 0, 0), **const_kw),
                pl.BlockSpec((2, n_suffix, D),
                             lambda b, lbl, clu: (0, 0, 0), **const_kw),
                pl.BlockSpec((num_class, n_cls, D),
                             lambda b, lbl, clu: (0, 0, 0), **const_kw),
            ],
            out_specs=pl.BlockSpec((bb, T, D), lambda b, lbl, clu: (b, 0, 0)),
        )
        return pl.pallas_call(
            kernel,
            out_shape=out_shape,
            grid_spec=grid_spec,
            compiler_params=pltpu.CompilerParams(
                dimension_semantics=("parallel",),   # disjoint output rows
                vmem_limit_bytes=vmem_limit),
            cost_estimate=cost,
        )(label_i, cluster_i, prefix_stacked, suffix_stacked, cls_table)

    try:
        return _run(single_buffer_constants=True)
    except Exception:
        # TODO(synk): this jax version rejected BlockSpec(pipeline_mode=
        # pl.Buffered(1)); fall back to default double-buffered constants.
        return _run(single_buffer_constants=False)


def reference_forward(label, cluster, cls_ctx_param,
                      token_prefix, token_suffix,
                      token_prefix_cluster, token_suffix_cluster):
    b = label.shape[0]
    cls_ctx = cls_ctx_param[label]                             # (B, n_cls, D)
    prefix = jnp.broadcast_to(token_prefix, (b,) + token_prefix.shape[1:])
    suffix = jnp.broadcast_to(token_suffix, (b,) + token_suffix.shape[1:])
    prompts = jnp.concatenate([prefix, cls_ctx, suffix], axis=1)
    prefix_c = jnp.broadcast_to(token_prefix_cluster,
                                (b,) + token_prefix_cluster.shape[1:])
    suffix_c = jnp.broadcast_to(token_suffix_cluster,
                                (b,) + token_suffix_cluster.shape[1:])
    prompts_c = jnp.concatenate([prefix_c, cls_ctx, suffix_c], axis=1)
    mask = (cluster != 0)[:, None, None]
    return jnp.where(mask, prompts_c, prompts)


if __name__ == "__main__":
    # Small, module-consistent shapes (real module: ctx_dim=512, T=77).
    num_class = 10
    n_ctx = 4            # "X X X X" -> n_prefix = n_ctx + 1 = 5
    n_cls_ctx = 4
    ctx_dim = 128
    n_prefix = n_ctx + 1
    n_suffix = 7         # synthetic suffix length; T = 5 + 4 + 7 = 16
    B = 7                # odd batch -> 2 grid blocks, partial last block

    key = jax.random.PRNGKey(0)
    k1, k2, k3, k4, k5, k6, k7 = jax.random.split(key, 7)

    # nn.init.normal_(cls_vectors, std=0.02)
    cls_ctx_param = 0.02 * jax.random.normal(
        k1, (num_class, n_cls_ctx, ctx_dim), dtype=jnp.float32)

    # TODO(synk): clip.tokenize + token_embedding buffers are replaced by
    # deterministic synthetic embeddings (no checkpoint / tokenizer in-script).
    token_prefix = jax.random.normal(k2, (1, n_prefix, ctx_dim), jnp.float32)
    token_suffix = jax.random.normal(k3, (1, n_suffix, ctx_dim), jnp.float32)
    token_prefix_cluster = jax.random.normal(k4, (1, n_prefix, ctx_dim), jnp.float32)
    token_suffix_cluster = jax.random.normal(k5, (1, n_suffix, ctx_dim), jnp.float32)

    label = jax.random.randint(k6, (B,), 0, num_class, dtype=jnp.int32)
    cluster = jax.random.bernoulli(k7, 0.5, (B,)).astype(jnp.int32)

    out = prompt_learner_cluster_forward(
        label, cluster, cls_ctx_param,
        token_prefix, token_suffix,
        token_prefix_cluster, token_suffix_cluster)
    out = jax.block_until_ready(out)

    ref = reference_forward(
        label, cluster, cls_ctx_param,
        token_prefix, token_suffix,
        token_prefix_cluster, token_suffix_cluster)

    assert out.shape == (B, n_prefix + n_cls_ctx + n_suffix, ctx_dim), out.shape
    assert jnp.allclose(out, ref, atol=1e-6), "mismatch vs pure-JAX reference"
    print("KERNEL_OK")
</pallas_src>

<mosaic_0001>
module attributes {stable_mosaic.version = 11 : i64} {
  func.func @_prompt_kernel(%arg0: i32, %arg1: memref<8xi32, #tpu.memory_space<smem>>, %arg2: memref<8xi32, #tpu.memory_space<smem>>, %arg3: memref<2x5x128xf32, #tpu.memory_space<vmem>>, %arg4: memref<2x7x128xf32, #tpu.memory_space<vmem>>, %arg5: memref<10x4x128xf32, #tpu.memory_space<vmem>>, %arg6: memref<4x16x128xf32, #tpu.memory_space<vmem>>) attributes {dimension_semantics = [#tpu.dimension_semantics<parallel>], iteration_bounds = array<i64: 2>, scalar_prefetch = 2 : i64, scratch_operands = 0 : i64, tpu.core_type = #tpu.core_type<tc>, window_params = [{pipeline_mode = #tpu.pipeline_mode<synchronous>, transform_indices = @transform_0, window_bounds = array<i64: 2, 5, 128>}, {pipeline_mode = #tpu.pipeline_mode<synchronous>, transform_indices = @transform_1, window_bounds = array<i64: 2, 7, 128>}, {pipeline_mode = #tpu.pipeline_mode<synchronous>, transform_indices = @transform_2, window_bounds = array<i64: 10, 4, 128>}, {transform_indices = @transform_3, window_bounds = array<i64: 4, 16, 128>}]} {
    %c4_i32 = arith.constant 4 : i32
    %0 = arith.muli %arg0, %c4_i32 : i32
    %c0 = arith.constant 0 : index
    %c0_0 = arith.constant 0 : index
    %c0_1 = arith.constant 0 : index
    %1 = vector.load %arg3[%c0, %c0_0, %c0_1] : memref<2x5x128xf32, #tpu.memory_space<vmem>>, vector<1x5x128xf32>
    %2 = vector.shape_cast %1 : vector<1x5x128xf32> to vector<5x128xf32>
    %c1 = arith.constant 1 : index
    %c0_2 = arith.constant 0 : index
    %c0_3 = arith.constant 0 : index
    %3 = vector.load %arg3[%c1, %c0_2, %c0_3] : memref<2x5x128xf32, #tpu.memory_space<vmem>>, vector<1x5x128xf32>
    %4 = vector.shape_cast %3 : vector<1x5x128xf32> to vector<5x128xf32>
    %c0_i32 = arith.constant 0 : i32
    %5 = arith.addi %0, %c0_i32 : i32
    %6 = arith.index_cast %5 : i32 to index
    %7 = memref.load %arg1[%6] : memref<8xi32, #tpu.memory_space<smem>>
    %c0_i32_4 = arith.constant 0 : i32
    %c9_i32 = arith.constant 9 : i32
    %8 = arith.maxsi %c0_i32_4, %7 : i32
    %9 = arith.minsi %c9_i32, %8 : i32
    %10 = arith.index_cast %5 : i32 to index
    %11 = memref.load %arg2[%10] : memref<8xi32, #tpu.memory_space<smem>>
    %c0_i32_5 = arith.constant 0 : i32
    %12 = arith.cmpi ne, %11, %c0_i32_5 : i32
    %13 = arith.select %12, %4, %2 : vector<5x128xf32>
    %c1_i32 = arith.constant 1 : i32
    %c0_i32_6 = arith.constant 0 : i32
    %14 = arith.select %12, %c1_i32, %c0_i32_6 : i32
    %15 = arith.index_cast %14 : i32 to index
    %c0_7 = arith.constant 0 : index
    %c0_8 = arith.constant 0 : index
    %16 = vector.load %arg4[%15, %c0_7, %c0_8] : memref<2x7x128xf32, #tpu.memory_space<vmem>>, vector<1x7x128xf32>
    %17 = vector.shape_cast %16 : vector<1x7x128xf32> to vector<7x128xf32>
    %18 = arith.index_cast %9 : i32 to index
    %c0_9 = arith.constant 0 : index
    %c0_10 = arith.constant 0 : index
    %19 = vector.load %arg5[%18, %c0_9, %c0_10] : memref<10x4x128xf32, #tpu.memory_space<vmem>>, vector<1x4x128xf32>
    %20 = vector.shape_cast %19 : vector<1x4x128xf32> to vector<4x128xf32>
    %21 = arith.index_cast %c0_i32 : i32 to index
    %c0_11 = arith.constant 0 : index
    %c0_12 = arith.constant 0 : index
    %22 = vector.load %arg6[%21, %c0_11, %c0_12] : memref<4x16x128xf32, #tpu.memory_space<vmem>>, vector<1x5x128xf32>
    %23 = vector.shape_cast %22 : vector<1x5x128xf32> to vector<5x128xf32>
    %24 = vector.shape_cast %13 : vector<5x128xf32> to vector<1x5x128xf32>
    tpu.vector_store %arg6[%21, %c0_11, %c0_12], %24 {strides = array<i32>} : memref<4x16x128xf32, #tpu.memory_space<vmem>>, vector<1x5x128xf32>,
    %25 = arith.index_cast %c0_i32 : i32 to index
    %c5 = arith.constant 5 : index
    %c0_13 = arith.constant 0 : index
    %26 = vector.load %arg6[%25, %c5, %c0_13] : memref<4x16x128xf32, #tpu.memory_space<vmem>>, vector<1x4x128xf32>
    %27 = vector.shape_cast %26 : vector<1x4x128xf32> to vector<4x128xf32>
    %28 = vector.shape_cast %20 : vector<4x128xf32> to vector<1x4x128xf32>
    tpu.vector_store %arg6[%25, %c5, %c0_13], %28 {strides = array<i32>} : memref<4x16x128xf32, #tpu.memory_space<vmem>>, vector<1x4x128xf32>,
    %29 = arith.index_cast %c0_i32 : i32 to index
    %c9 = arith.constant 9 : index
    %c0_14 = arith.constant 0 : index
    %30 = vector.load %arg6[%29, %c9, %c0_14] : memref<4x16x128xf32, #tpu.memory_space<vmem>>, vector<1x7x128xf32>
    %31 = vector.shape_cast %30 : vector<1x7x128xf32> to vector<7x128xf32>
    %32 = vector.shape_cast %17 : vector<7x128xf32> to vector<1x7x128xf32>
    tpu.vector_store %arg6[%29, %c9, %c0_14], %32 {strides = array<i32>} : memref<4x16x128xf32, #tpu.memory_space<vmem>>, vector<1x7x128xf32>,
    %c1_i32_15 = arith.constant 1 : i32
    %33 = arith.addi %0, %c1_i32_15 : i32
    %34 = arith.index_cast %33 : i32 to index
    %35 = memref.load %arg1[%34] : memref<8xi32, #tpu.memory_space<smem>>
    %c0_i32_16 = arith.constant 0 : i32
    %c9_i32_17 = arith.constant 9 : i32
    %36 = arith.maxsi %c0_i32_16, %35 : i32
    %37 = arith.minsi %c9_i32_17, %36 : i32
    %38 = arith.index_cast %33 : i32 to index
    %39 = memref.load %arg2[%38] : memref<8xi32, #tpu.memory_space<smem>>
    %c0_i32_18 = arith.constant 0 : i32
    %40 = arith.cmpi ne, %39, %c0_i32_18 : i32
    %41 = arith.select %40, %4, %2 : vector<5x128xf32>
    %c1_i32_19 = arith.constant 1 : i32
    %c0_i32_20 = arith.constant 0 : i32
    %42 = arith.select %40, %c1_i32_19, %c0_i32_20 : i32
    %43 = arith.index_cast %42 : i32 to index
    %c0_21 = arith.constant 0 : index
    %c0_22 = arith.constant 0 : index
    %44 = vector.load %arg4[%43, %c0_21, %c0_22] : memref<2x7x128xf32, #tpu.memory_space<vmem>>, vector<1x7x128xf32>
    %45 = vector.shape_cast %44 : vector<1x7x128xf32> to vector<7x128xf32>
    %46 = arith.index_cast %37 : i32 to index
    %c0_23 = arith.constant 0 : index
    %c0_24 = arith.constant 0 : index
    %47 = vector.load %arg5[%46, %c0_23, %c0_24] : memref<10x4x128xf32, #tpu.memory_space<vmem>>, vector<1x4x128xf32>
    %48 = vector.shape_cast %47 : vector<1x4x128xf32> to vector<4x128xf32>
    %49 = arith.index_cast %c1_i32_15 : i32 to index
    %c0_25 = arith.constant 0 : index
    %c0_26 = arith.constant 0 : index
    %50 = vector.load %arg6[%49, %c0_25, %c0_26] : memref<4x16x128xf32, #tpu.memory_space<vmem>>, vector<1x5x128xf32>
    %51 = vector.shape_cast %50 : vector<1x5x128xf32> to vector<5x128xf32>
    %52 = vector.shape_cast %41 : vector<5x128xf32> to vector<1x5x128xf32>
    tpu.vector_store %arg6[%49, %c0_25, %c0_26], %52 {strides = array<i32>} : memref<4x16x128xf32, #tpu.memory_space<vmem>>, vector<1x5x128xf32>,
    %53 = arith.index_cast %c1_i32_15 : i32 to index
    %c5_27 = arith.constant 5 : index
    %c0_28 = arith.constant 0 : index
    %54 = vector.load %arg6[%53, %c5_27, %c0_28] : memref<4x16x128xf32, #tpu.memory_space<vmem>>, vector<1x4x128xf32>
    %55 = vector.shape_cast %54 : vector<1x4x128xf32> to vector<4x128xf32>
    %56 = vector.shape_cast %48 : vector<4x128xf32> to vector<1x4x128xf32>
    tpu.vector_store %arg6[%53, %c5_27, %c0_28], %56 {strides = array<i32>} : memref<4x16x128xf32, #tpu.memory_space<vmem>>, vector<1x4x128xf32>,
    %57 = arith.index_cast %c1_i32_15 : i32 to index
    %c9_29 = arith.constant 9 : index
    %c0_30 = arith.constant 0 : index
    %58 = vector.load %arg6[%57, %c9_29, %c0_30] : memref<4x16x128xf32, #tpu.memory_space<vmem>>, vector<1x7x128xf32>
    %59 = vector.shape_cast %58 : vector<1x7x128xf32> to vector<7x128xf32>
    %60 = vector.shape_cast %45 : vector<7x128xf32> to vector<1x7x128xf32>
    tpu.vector_store %arg6[%57, %c9_29, %c0_30], %60 {strides = array<i32>} : memref<4x16x128xf32, #tpu.memory_space<vmem>>, vector<1x7x128xf32>,
    %c2_i32 = arith.constant 2 : i32
    %61 = arith.addi %0, %c2_i32 : i32
    %62 = arith.index_cast %61 : i32 to index
    %63 = memref.load %arg1[%62] : memref<8xi32, #tpu.memory_space<smem>>
    %c0_i32_31 = arith.constant 0 : i32
    %c9_i32_32 = arith.constant 9 : i32
    %64 = arith.maxsi %c0_i32_31, %63 : i32
    %65 = arith.minsi %c9_i32_32, %64 : i32
    %66 = arith.index_cast %61 : i32 to index
    %67 = memref.load %arg2[%66] : memref<8xi32, #tpu.memory_space<smem>>
    %c0_i32_33 = arith.constant 0 : i32
    %68 = arith.cmpi ne, %67, %c0_i32_33 : i32
    %69 = arith.select %68, %4, %2 : vector<5x128xf32>
    %c1_i32_34 = arith.constant 1 : i32
    %c0_i32_35 = arith.constant 0 : i32
    %70 = arith.select %68, %c1_i32_34, %c0_i32_35 : i32
    %71 = arith.index_cast %70 : i32 to index
    %c0_36 = arith.constant 0 : index
    %c0_37 = arith.constant 0 : index
    %72 = vector.load %arg4[%71, %c0_36, %c0_37] : memref<2x7x128xf32, #tpu.memory_space<vmem>>, vector<1x7x128xf32>
    %73 = vector.shape_cast %72 : vector<1x7x128xf32> to vector<7x128xf32>
    %74 = arith.index_cast %65 : i32 to index
    %c0_38 = arith.constant 0 : index
    %c0_39 = arith.constant 0 : index
    %75 = vector.load %arg5[%74, %c0_38, %c0_39] : memref<10x4x128xf32, #tpu.memory_space<vmem>>, vector<1x4x128xf32>
    %76 = vector.shape_cast %75 : vector<1x4x128xf32> to vector<4x128xf32>
    %77 = arith.index_cast %c2_i32 : i32 to index
    %c0_40 = arith.constant 0 : index
    %c0_41 = arith.constant 0 : index
    %78 = vector.load %arg6[%77, %c0_40, %c0_41] : memref<4x16x128xf32, #tpu.memory_space<vmem>>, vector<1x5x128xf32>
    %79 = vector.shape_cast %78 : vector<1x5x128xf32> to vector<5x128xf32>
    %80 = vector.shape_cast %69 : vector<5x128xf32> to vector<1x5x128xf32>
    tpu.vector_store %arg6[%77, %c0_40, %c0_41], %80 {strides = array<i32>} : memref<4x16x128xf32, #tpu.memory_space<vmem>>, vector<1x5x128xf32>,
    %81 = arith.index_cast %c2_i32 : i32 to index
    %c5_42 = arith.constant 5 : index
    %c0_43 = arith.constant 0 : index
    %82 = vector.load %arg6[%81, %c5_42, %c0_43] : memref<4x16x128xf32, #tpu.memory_space<vmem>>, vector<1x4x128xf32>
    %83 = vector.shape_cast %82 : vector<1x4x128xf32> to vector<4x128xf32>
    %84 = vector.shape_cast %76 : vector<4x128xf32> to vector<1x4x128xf32>
    tpu.vector_store %arg6[%81, %c5_42, %c0_43], %84 {strides = array<i32>} : memref<4x16x128xf32, #tpu.memory_space<vmem>>, vector<1x4x128xf32>,
    %85 = arith.index_cast %c2_i32 : i32 to index
    %c9_44 = arith.constant 9 : index
    %c0_45 = arith.constant 0 : index
    %86 = vector.load %arg6[%85, %c9_44, %c0_45] : memref<4x16x128xf32, #tpu.memory_space<vmem>>, vector<1x7x128xf32>
    %87 = vector.shape_cast %86 : vector<1x7x128xf32> to vector<7x128xf32>
    %88 = vector.shape_cast %73 : vector<7x128xf32> to vector<1x7x128xf32>
    tpu.vector_store %arg6[%85, %c9_44, %c0_45], %88 {strides = array<i32>} : memref<4x16x128xf32, #tpu.memory_space<vmem>>, vector<1x7x128xf32>,
    %c3_i32 = arith.constant 3 : i32
    %89 = arith.addi %0, %c3_i32 : i32
    %90 = arith.index_cast %89 : i32 to index
    %91 = memref.load %arg1[%90] : memref<8xi32, #tpu.memory_space<smem>>
    %c0_i32_46 = arith.constant 0 : i32
    %c9_i32_47 = arith.constant 9 : i32
    %92 = arith.maxsi %c0_i32_46, %91 : i32
    %93 = arith.minsi %c9_i32_47, %92 : i32
    %94 = arith.index_cast %89 : i32 to index
    %95 = memref.load %arg2[%94] : memref<8xi32, #tpu.memory_space<smem>>
    %c0_i32_48 = arith.constant 0 : i32
    %96 = arith.cmpi ne, %95, %c0_i32_48 : i32
    %97 = arith.select %96, %4, %2 : vector<5x128xf32>
    %c1_i32_49 = arith.constant 1 : i32
    %c0_i32_50 = arith.constant 0 : i32
    %98 = arith.select %96, %c1_i32_49, %c0_i32_50 : i32
    %99 = arith.index_cast %98 : i32 to index
    %c0_51 = arith.constant 0 : index
    %c0_52 = arith.constant 0 : index
    %100 = vector.load %arg4[%99, %c0_51, %c0_52] : memref<2x7x128xf32, #tpu.memory_space<vmem>>, vector<1x7x128xf32>
    %101 = vector.shape_cast %100 : vector<1x7x128xf32> to vector<7x128xf32>
    %102 = arith.index_cast %93 : i32 to index
    %c0_53 = arith.constant 0 : index
    %c0_54 = arith.constant 0 : index
    %103 = vector.load %arg5[%102, %c0_53, %c0_54] : memref<10x4x128xf32, #tpu.memory_space<vmem>>, vector<1x4x128xf32>
    %104 = vector.shape_cast %103 : vector<1x4x128xf32> to vector<4x128xf32>
    %105 = arith.index_cast %c3_i32 : i32 to index
    %c0_55 = arith.constant 0 : index
    %c0_56 = arith.constant 0 : index
    %106 = vector.load %arg6[%105, %c0_55, %c0_56] : memref<4x16x128xf32, #tpu.memory_space<vmem>>, vector<1x5x128xf32>
    %107 = vector.shape_cast %106 : vector<1x5x128xf32> to vector<5x128xf32>
    %108 = vector.shape_cast %97 : vector<5x128xf32> to vector<1x5x128xf32>
    tpu.vector_store %arg6[%105, %c0_55, %c0_56], %108 {strides = array<i32>} : memref<4x16x128xf32, #tpu.memory_space<vmem>>, vector<1x5x128xf32>,
    %109 = arith.index_cast %c3_i32 : i32 to index
    %c5_57 = arith.constant 5 : index
    %c0_58 = arith.constant 0 : index
    %110 = vector.load %arg6[%109, %c5_57, %c0_58] : memref<4x16x128xf32, #tpu.memory_space<vmem>>, vector<1x4x128xf32>
    %111 = vector.shape_cast %110 : vector<1x4x128xf32> to vector<4x128xf32>
    %112 = vector.shape_cast %104 : vector<4x128xf32> to vector<1x4x128xf32>
    tpu.vector_store %arg6[%109, %c5_57, %c0_58], %112 {strides = array<i32>} : memref<4x16x128xf32, #tpu.memory_space<vmem>>, vector<1x4x128xf32>,
    %113 = arith.index_cast %c3_i32 : i32 to index
    %c9_59 = arith.constant 9 : index
    %c0_60 = arith.constant 0 : index
    %114 = vector.load %arg6[%113, %c9_59, %c0_60] : memref<4x16x128xf32, #tpu.memory_space<vmem>>, vector<1x7x128xf32>
    %115 = vector.shape_cast %114 : vector<1x7x128xf32> to vector<7x128xf32>
    %116 = vector.shape_cast %101 : vector<7x128xf32> to vector<1x7x128xf32>
    tpu.vector_store %arg6[%113, %c9_59, %c0_60], %116 {strides = array<i32>} : memref<4x16x128xf32, #tpu.memory_space<vmem>>, vector<1x7x128xf32>,
    %c4_i32_61 = arith.constant 4 : i32
    return
  }
  func.func @transform_0(%arg0: i32, %arg1: memref<8xi32, #tpu.memory_space<smem>>, %arg2: memref<8xi32, #tpu.memory_space<smem>>) -> (i32, i32, i32) {
    %c0_i32 = arith.constant 0 : i32
    %c0_i32_0 = arith.constant 0 : i32
    %c0_i32_1 = arith.constant 0 : i32
    %c0_i32_2 = arith.constant 0 : i32
    return %c0_i32, %c0_i32_0, %c0_i32_1 : i32, i32, i32
  }
  func.func @transform_1(%arg0: i32, %arg1: memref<8xi32, #tpu.memory_space<smem>>, %arg2: memref<8xi32, #tpu.memory_space<smem>>) -> (i32, i32, i32) {
    %c0_i32 = arith.constant 0 : i32
    %c0_i32_0 = arith.constant 0 : i32
    %c0_i32_1 = arith.constant 0 : i32
    %c0_i32_2 = arith.constant 0 : i32
    return %c0_i32, %c0_i32_0, %c0_i32_1 : i32, i32, i32
  }
  func.func @transform_2(%arg0: i32, %arg1: memref<8xi32, #tpu.memory_space<smem>>, %arg2: memref<8xi32, #tpu.memory_space<smem>>) -> (i32, i32, i32) {
    %c0_i32 = arith.constant 0 : i32
    %c0_i32_0 = arith.constant 0 : i32
    %c0_i32_1 = arith.constant 0 : i32
    %c0_i32_2 = arith.constant 0 : i32
    return %c0_i32, %c0_i32_0, %c0_i32_1 : i32, i32, i32
  }
  func.func @transform_3(%arg0: i32, %arg1: memref<8xi32, #tpu.memory_space<smem>>, %arg2: memref<8xi32, #tpu.memory_space<smem>>) -> (i32, i32, i32) {
    %c0_i32 = arith.constant 0 : i32
    %c0_i32_0 = arith.constant 0 : i32
    %c0_i32_1 = arith.constant 0 : i32
    return %arg0, %c0_i32, %c0_i32_0 : i32, i32, i32
  }
}

module attributes {stable_mosaic.version = 11 : i64} {
  func.func @_prompt_kernel(%arg0: i32, %arg1: memref<8xi32, #tpu.memory_space<smem>>, %arg2: memref<8xi32, #tpu.memory_space<smem>>, %arg3: memref<2x5x128xf32, #tpu.memory_space<vmem>>, %arg4: memref<2x7x128xf32, #tpu.memory_space<vmem>>, %arg5: memref<10x4x128xf32, #tpu.memory_space<vmem>>, %arg6: memref<4x16x128xf32, #tpu.memory_space<vmem>>) attributes {dimension_semantics = [#tpu.dimension_semantics<parallel>], iteration_bounds = array<i64: 2>, scalar_prefetch = 2 : i64, scratch_operands = 0 : i64, tpu.core_type = #tpu.core_type<tc>, window_params = [{pipeline_mode = #tpu.pipeline_mode<synchronous>, transform_indices = @transform_0, window_bounds = array<i64: 2, 5, 128>}, {pipeline_mode = #tpu.pipeline_mode<synchronous>, transform_indices = @transform_1, window_bounds = array<i64: 2, 7, 128>}, {pipeline_mode = #tpu.pipeline_mode<synchronous>, transform_indices = @transform_2, window_bounds = array<i64: 10, 4, 128>}, {transform_indices = @transform_3, window_bounds = array<i64: 4, 16, 128>}]} {
    %c4_i32 = arith.constant 4 : i32
    %0 = arith.muli %arg0, %c4_i32 : i32
    %c0 = arith.constant 0 : index
    %c0_0 = arith.constant 0 : index
    %c0_1 = arith.constant 0 : index
    %1 = vector.load %arg3[%c0, %c0_0, %c0_1] : memref<2x5x128xf32, #tpu.memory_space<vmem>>, vector<1x5x128xf32>
    %2 = vector.shape_cast %1 : vector<1x5x128xf32> to vector<5x128xf32>
    %c1 = arith.constant 1 : index
    %c0_2 = arith.constant 0 : index
    %c0_3 = arith.constant 0 : index
    %3 = vector.load %arg3[%c1, %c0_2, %c0_3] : memref<2x5x128xf32, #tpu.memory_space<vmem>>, vector<1x5x128xf32>
    %4 = vector.shape_cast %3 : vector<1x5x128xf32> to vector<5x128xf32>
    %c0_i32 = arith.constant 0 : i32
    %5 = arith.addi %0, %c0_i32 : i32
    %6 = arith.index_cast %5 : i32 to index
    %7 = memref.load %arg1[%6] : memref<8xi32, #tpu.memory_space<smem>>
    %c0_i32_4 = arith.constant 0 : i32
    %c9_i32 = arith.constant 9 : i32
    %8 = arith.maxsi %c0_i32_4, %7 : i32
    %9 = arith.minsi %c9_i32, %8 : i32
    %10 = arith.index_cast %5 : i32 to index
    %11 = memref.load %arg2[%10] : memref<8xi32, #tpu.memory_space<smem>>
    %c0_i32_5 = arith.constant 0 : i32
    %12 = arith.cmpi ne, %11, %c0_i32_5 : i32
    %13 = arith.select %12, %4, %2 : vector<5x128xf32>
    %c1_i32 = arith.constant 1 : i32
    %c0_i32_6 = arith.constant 0 : i32
    %14 = arith.select %12, %c1_i32, %c0_i32_6 : i32
    %15 = arith.index_cast %14 : i32 to index
    %c0_7 = arith.constant 0 : index
    %c0_8 = arith.constant 0 : index
    %16 = vector.load %arg4[%15, %c0_7, %c0_8] : memref<2x7x128xf32, #tpu.memory_space<vmem>>, vector<1x7x128xf32>
    %17 = vector.shape_cast %16 : vector<1x7x128xf32> to vector<7x128xf32>
    %18 = arith.index_cast %9 : i32 to index
    %c0_9 = arith.constant 0 : index
    %c0_10 = arith.constant 0 : index
    %19 = vector.load %arg5[%18, %c0_9, %c0_10] : memref<10x4x128xf32, #tpu.memory_space<vmem>>, vector<1x4x128xf32>
    %20 = vector.shape_cast %19 : vector<1x4x128xf32> to vector<4x128xf32>
    %21 = arith.index_cast %c0_i32 : i32 to index
    %c0_11 = arith.constant 0 : index
    %c0_12 = arith.constant 0 : index
    %22 = vector.load %arg6[%21, %c0_11, %c0_12] : memref<4x16x128xf32, #tpu.memory_space<vmem>>, vector<1x5x128xf32>
    %23 = vector.shape_cast %22 : vector<1x5x128xf32> to vector<5x128xf32>
    %24 = vector.shape_cast %13 : vector<5x128xf32> to vector<1x5x128xf32>
    tpu.vector_store %arg6[%21, %c0_11, %c0_12], %24 {strides = array<i32>} : memref<4x16x128xf32, #tpu.memory_space<vmem>>, vector<1x5x128xf32>,
    %25 = arith.index_cast %c0_i32 : i32 to index
    %c5 = arith.constant 5 : index
    %c0_13 = arith.constant 0 : index
    %26 = vector.load %arg6[%25, %c5, %c0_13] : memref<4x16x128xf32, #tpu.memory_space<vmem>>, vector<1x4x128xf32>
    %27 = vector.shape_cast %26 : vector<1x4x128xf32> to vector<4x128xf32>
    %28 = vector.shape_cast %20 : vector<4x128xf32> to vector<1x4x128xf32>
    tpu.vector_store %arg6[%25, %c5, %c0_13], %28 {strides = array<i32>} : memref<4x16x128xf32, #tpu.memory_space<vmem>>, vector<1x4x128xf32>,
    %29 = arith.index_cast %c0_i32 : i32 to index
    %c9 = arith.constant 9 : index
    %c0_14 = arith.constant 0 : index
    %30 = vector.load %arg6[%29, %c9, %c0_14] : memref<4x16x128xf32, #tpu.memory_space<vmem>>, vector<1x7x128xf32>
    %31 = vector.shape_cast %30 : vector<1x7x128xf32> to vector<7x128xf32>
    %32 = vector.shape_cast %17 : vector<7x128xf32> to vector<1x7x128xf32>
    tpu.vector_store %arg6[%29, %c9, %c0_14], %32 {strides = array<i32>} : memref<4x16x128xf32, #tpu.memory_space<vmem>>, vector<1x7x128xf32>,
    %c1_i32_15 = arith.constant 1 : i32
    %33 = arith.addi %0, %c1_i32_15 : i32
    %34 = arith.index_cast %33 : i32 to index
    %35 = memref.load %arg1[%34] : memref<8xi32, #tpu.memory_space<smem>>
    %c0_i32_16 = arith.constant 0 : i32
    %c9_i32_17 = arith.constant 9 : i32
    %36 = arith.maxsi %c0_i32_16, %35 : i32
    %37 = arith.minsi %c9_i32_17, %36 : i32
    %38 = arith.index_cast %33 : i32 to index
    %39 = memref.load %arg2[%38] : memref<8xi32, #tpu.memory_space<smem>>
    %c0_i32_18 = arith.constant 0 : i32
    %40 = arith.cmpi ne, %39, %c0_i32_18 : i32
    %41 = arith.select %40, %4, %2 : vector<5x128xf32>
    %c1_i32_19 = arith.constant 1 : i32
    %c0_i32_20 = arith.constant 0 : i32
    %42 = arith.select %40, %c1_i32_19, %c0_i32_20 : i32
    %43 = arith.index_cast %42 : i32 to index
    %c0_21 = arith.constant 0 : index
    %c0_22 = arith.constant 0 : index
    %44 = vector.load %arg4[%43, %c0_21, %c0_22] : memref<2x7x128xf32, #tpu.memory_space<vmem>>, vector<1x7x128xf32>
    %45 = vector.shape_cast %44 : vector<1x7x128xf32> to vector<7x128xf32>
    %46 = arith.index_cast %37 : i32 to index
    %c0_23 = arith.constant 0 : index
    %c0_24 = arith.constant 0 : index
    %47 = vector.load %arg5[%46, %c0_23, %c0_24] : memref<10x4x128xf32, #tpu.memory_space<vmem>>, vector<1x4x128xf32>
    %48 = vector.shape_cast %47 : vector<1x4x128xf32> to vector<4x128xf32>
    %49 = arith.index_cast %c1_i32_15 : i32 to index
    %c0_25 = arith.constant 0 : index
    %c0_26 = arith.constant 0 : index
    %50 = vector.load %arg6[%49, %c0_25, %c0_26] : memref<4x16x128xf32, #tpu.memory_space<vmem>>, vector<1x5x128xf32>
    %51 = vector.shape_cast %50 : vector<1x5x128xf32> to vector<5x128xf32>
    %52 = vector.shape_cast %41 : vector<5x128xf32> to vector<1x5x128xf32>
    tpu.vector_store %arg6[%49, %c0_25, %c0_26], %52 {strides = array<i32>} : memref<4x16x128xf32, #tpu.memory_space<vmem>>, vector<1x5x128xf32>,
    %53 = arith.index_cast %c1_i32_15 : i32 to index
    %c5_27 = arith.constant 5 : index
    %c0_28 = arith.constant 0 : index
    %54 = vector.load %arg6[%53, %c5_27, %c0_28] : memref<4x16x128xf32, #tpu.memory_space<vmem>>, vector<1x4x128xf32>
    %55 = vector.shape_cast %54 : vector<1x4x128xf32> to vector<4x128xf32>
    %56 = vector.shape_cast %48 : vector<4x128xf32> to vector<1x4x128xf32>
    tpu.vector_store %arg6[%53, %c5_27, %c0_28], %56 {strides = array<i32>} : memref<4x16x128xf32, #tpu.memory_space<vmem>>, vector<1x4x128xf32>,
    %57 = arith.index_cast %c1_i32_15 : i32 to index
    %c9_29 = arith.constant 9 : index
    %c0_30 = arith.constant 0 : index
    %58 = vector.load %arg6[%57, %c9_29, %c0_30] : memref<4x16x128xf32, #tpu.memory_space<vmem>>, vector<1x7x128xf32>
    %59 = vector.shape_cast %58 : vector<1x7x128xf32> to vector<7x128xf32>
    %60 = vector.shape_cast %45 : vector<7x128xf32> to vector<1x7x128xf32>
    tpu.vector_store %arg6[%57, %c9_29, %c0_30], %60 {strides = array<i32>} : memref<4x16x128xf32, #tpu.memory_space<vmem>>, vector<1x7x128xf32>,
    %c2_i32 = arith.constant 2 : i32
    %61 = arith.addi %0, %c2_i32 : i32
    %62 = arith.index_cast %61 : i32 to index
    %63 = memref.load %arg1[%62] : memref<8xi32, #tpu.memory_space<smem>>
    %c0_i32_31 = arith.constant 0 : i32
    %c9_i32_32 = arith.constant 9 : i32
    %64 = arith.maxsi %c0_i32_31, %63 : i32
    %65 = arith.minsi %c9_i32_32, %64 : i32
    %66 = arith.index_cast %61 : i32 to index
    %67 = memref.load %arg2[%66] : memref<8xi32, #tpu.memory_space<smem>>
    %c0_i32_33 = arith.constant 0 : i32
    %68 = arith.cmpi ne, %67, %c0_i32_33 : i32
    %69 = arith.select %68, %4, %2 : vector<5x128xf32>
    %c1_i32_34 = arith.constant 1 : i32
    %c0_i32_35 = arith.constant 0 : i32
    %70 = arith.select %68, %c1_i32_34, %c0_i32_35 : i32
    %71 = arith.index_cast %70 : i32 to index
    %c0_36 = arith.constant 0 : index
    %c0_37 = arith.constant 0 : index
    %72 = vector.load %arg4[%71, %c0_36, %c0_37] : memref<2x7x128xf32, #tpu.memory_space<vmem>>, vector<1x7x128xf32>
    %73 = vector.shape_cast %72 : vector<1x7x128xf32> to vector<7x128xf32>
    %74 = arith.index_cast %65 : i32 to index
    %c0_38 = arith.constant 0 : index
    %c0_39 = arith.constant 0 : index
    %75 = vector.load %arg5[%74, %c0_38, %c0_39] : memref<10x4x128xf32, #tpu.memory_space<vmem>>, vector<1x4x128xf32>
    %76 = vector.shape_cast %75 : vector<1x4x128xf32> to vector<4x128xf32>
    %77 = arith.index_cast %c2_i32 : i32 to index
    %c0_40 = arith.constant 0 : index
    %c0_41 = arith.constant 0 : index
    %78 = vector.load %arg6[%77, %c0_40, %c0_41] : memref<4x16x128xf32, #tpu.memory_space<vmem>>, vector<1x5x128xf32>
    %79 = vector.shape_cast %78 : vector<1x5x128xf32> to vector<5x128xf32>
    %80 = vector.shape_cast %69 : vector<5x128xf32> to vector<1x5x128xf32>
    tpu.vector_store %arg6[%77, %c0_40, %c0_41], %80 {strides = array<i32>} : memref<4x16x128xf32, #tpu.memory_space<vmem>>, vector<1x5x128xf32>,
    %81 = arith.index_cast %c2_i32 : i32 to index
    %c5_42 = arith.constant 5 : index
    %c0_43 = arith.constant 0 : index
    %82 = vector.load %arg6[%81, %c5_42, %c0_43] : memref<4x16x128xf32, #tpu.memory_space<vmem>>, vector<1x4x128xf32>
    %83 = vector.shape_cast %82 : vector<1x4x128xf32> to vector<4x128xf32>
    %84 = vector.shape_cast %76 : vector<4x128xf32> to vector<1x4x128xf32>
    tpu.vector_store %arg6[%81, %c5_42, %c0_43], %84 {strides = array<i32>} : memref<4x16x128xf32, #tpu.memory_space<vmem>>, vector<1x4x128xf32>,
    %85 = arith.index_cast %c2_i32 : i32 to index
    %c9_44 = arith.constant 9 : index
    %c0_45 = arith.constant 0 : index
    %86 = vector.load %arg6[%85, %c9_44, %c0_45] : memref<4x16x128xf32, #tpu.memory_space<vmem>>, vector<1x7x128xf32>
    %87 = vector.shape_cast %86 : vector<1x7x128xf32> to vector<7x128xf32>
    %88 = vector.shape_cast %73 : vector<7x128xf32> to vector<1x7x128xf32>
    tpu.vector_store %arg6[%85, %c9_44, %c0_45], %88 {strides = array<i32>} : memref<4x16x128xf32, #tpu.memory_space<vmem>>, vector<1x7x128xf32>,
    %c3_i32 = arith.constant 3 : i32
    %89 = arith.addi %0, %c3_i32 : i32
    %90 = arith.index_cast %89 : i32 to index
    %91 = memref.load %arg1[%90] : memref<8xi32, #tpu.memory_space<smem>>
    %c0_i32_46 = arith.constant 0 : i32
    %c9_i32_47 = arith.constant 9 : i32
    %92 = arith.maxsi %c0_i32_46, %91 : i32
    %93 = arith.minsi %c9_i32_47, %92 : i32
    %94 = arith.index_cast %89 : i32 to index
    %95 = memref.load %arg2[%94] : memref<8xi32, #tpu.memory_space<smem>>
    %c0_i32_48 = arith.constant 0 : i32
    %96 = arith.cmpi ne, %95, %c0_i32_48 : i32
    %97 = arith.select %96, %4, %2 : vector<5x128xf32>
    %c1_i32_49 = arith.constant 1 : i32
    %c0_i32_50 = arith.constant 0 : i32
    %98 = arith.select %96, %c1_i32_49, %c0_i32_50 : i32
    %99 = arith.index_cast %98 : i32 to index
    %c0_51 = arith.constant 0 : index
    %c0_52 = arith.constant 0 : index
    %100 = vector.load %arg4[%99, %c0_51, %c0_52] : memref<2x7x128xf32, #tpu.memory_space<vmem>>, vector<1x7x128xf32>
    %101 = vector.shape_cast %100 : vector<1x7x128xf32> to vector<7x128xf32>
    %102 = arith.index_cast %93 : i32 to index
    %c0_53 = arith.constant 0 : index
    %c0_54 = arith.constant 0 : index
    %103 = vector.load %arg5[%102, %c0_53, %c0_54] : memref<10x4x128xf32, #tpu.memory_space<vmem>>, vector<1x4x128xf32>
    %104 = vector.shape_cast %103 : vector<1x4x128xf32> to vector<4x128xf32>
    %105 = arith.index_cast %c3_i32 : i32 to index
    %c0_55 = arith.constant 0 : index
    %c0_56 = arith.constant 0 : index
    %106 = vector.load %arg6[%105, %c0_55, %c0_56] : memref<4x16x128xf32, #tpu.memory_space<vmem>>, vector<1x5x128xf32>
    %107 = vector.shape_cast %106 : vector<1x5x128xf32> to vector<5x128xf32>
    %108 = vector.shape_cast %97 : vector<5x128xf32> to vector<1x5x128xf32>
    tpu.vector_store %arg6[%105, %c0_55, %c0_56], %108 {strides = array<i32>} : memref<4x16x128xf32, #tpu.memory_space<vmem>>, vector<1x5x128xf32>,
    %109 = arith.index_cast %c3_i32 : i32 to index
    %c5_57 = arith.constant 5 : index
    %c0_58 = arith.constant 0 : index
    %110 = vector.load %arg6[%109, %c5_57, %c0_58] : memref<4x16x128xf32, #tpu.memory_space<vmem>>, vector<1x4x128xf32>
    %111 = vector.shape_cast %110 : vector<1x4x128xf32> to vector<4x128xf32>
    %112 = vector.shape_cast %104 : vector<4x128xf32> to vector<1x4x128xf32>
    tpu.vector_store %arg6[%109, %c5_57, %c0_58], %112 {strides = array<i32>} : memref<4x16x128xf32, #tpu.memory_space<vmem>>, vector<1x4x128xf32>,
    %113 = arith.index_cast %c3_i32 : i32 to index
    %c9_59 = arith.constant 9 : index
    %c0_60 = arith.constant 0 : index
    %114 = vector.load %arg6[%113, %c9_59, %c0_60] : memref<4x16x128xf32, #tpu.memory_space<vmem>>, vector<1x7x128xf32>
    %115 = vector.shape_cast %114 : vector<1x7x128xf32> to vector<7x128xf32>
    %116 = vector.shape_cast %101 : vector<7x128xf32> to vector<1x7x128xf32>
    tpu.vector_store %arg6[%113, %c9_59, %c0_60], %116 {strides = array<i32>} : memref<4x16x128xf32, #tpu.memory_space<vmem>>, vector<1x7x128xf32>,
    %c4_i32_61 = arith.constant 4 : i32
    return
  }
  func.func @transform_0(%arg0: i32, %arg1: memref<8xi32, #tpu.memory_space<smem>>, %arg2: memref<8xi32, #tpu.memory_space<smem>>) -> (i32, i32, i32) {
    %c0_i32 = arith.constant 0 : i32
    %c0_i32_0 = arith.constant 0 : i32
    %c0_i32_1 = arith.constant 0 : i32
    %c0_i32_2 = arith.constant 0 : i32
    return %c0_i32, %c0_i32_0, %c0_i32_1 : i32, i32, i32
  }
  func.func @transform_1(%arg0: i32, %arg1: memref<8xi32, #tpu.memory_space<smem>>, %arg2: memref<8xi32, #tpu.memory_space<smem>>) -> (i32, i32, i32) {
    %c0_i32 = arith.constant 0 : i32
    %c0_i32_0 = arith.constant 0 : i32
    %c0_i32_1 = arith.constant 0 : i32
    %c0_i32_2 = arith.constant 0 : i32
    return %c0_i32, %c0_i32_0, %c0_i32_1 : i32, i32, i32
  }
  func.func @transform_2(%arg0: i32, %arg1: memref<8xi32, #tpu.memory_space<smem>>, %arg2: memref<8xi32, #tpu.memory_space<smem>>) -> (i32, i32, i32) {
    %c0_i32 = arith.constant 0 : i32
    %c0_i32_0 = arith.constant 0 : i32
    %c0_i32_1 = arith.constant 0 : i32
    %c0_i32_2 = arith.constant 0 : i32
    return %c0_i32, %c0_i32_0, %c0_i32_1 : i32, i32, i32
  }
  func.func @transform_3(%arg0: i32, %arg1: memref<8xi32, #tpu.memory_space<smem>>, %arg2: memref<8xi32, #tpu.memory_space<smem>>) -> (i32, i32, i32) {
    %c0_i32 = arith.constant 0 : i32
    %c0_i32_0 = arith.constant 0 : i32
    %c0_i32_1 = arith.constant 0 : i32
    return %arg0, %c0_i32, %c0_i32_0 : i32, i32, i32
  }
}

</mosaic_0001>

<llo_original>
// kernel: tpu_custom_call.1
$region0: #{tpu_custom_call.1}
  #allocation0 [shape = 'u32[]', space=smem, size = 0x4, offset = 0x4, fixed_abs, tag = 'smem constant byte address 0x4 - core index']
  #allocation1 [shape = 'u32[144,128]{1,0:T(1,128)}', space=vmem, size = 0x12000, scoped, tag = 'internal scratch']
  #allocation2 [shape = 's32[1]{0}', space=sflag, size = 0x4, scoped, tag = 'scoped memory for tpu_custom_call.1']
  #allocation3 [shape = 'u8[512]{0}', space=smem, size = 0x200, scoped, tag = 'prefetched SMEM operand 0']
  #allocation4 [shape = 'u8[512]{0}', space=smem, size = 0x200, scoped, tag = 'prefetched SMEM operand 1']
  %s0 = inlined_call_operand.vmem [shape: s32[8], index: 0, kind: input, shape index: {}]
  %s1 = inlined_call_operand.vmem [shape: s32[8], index: 1, kind: input, shape index: {}]
  %s2 = inlined_call_operand.vmem [shape: f32[2,5,128], index: 2, kind: input, shape index: {}]
  %s3 = inlined_call_operand.vmem [shape: f32[2,7,128], index: 3, kind: input, shape index: {}]
  %s4 = inlined_call_operand.vmem [shape: f32[10,4,128], index: 4, kind: input, shape index: {}]
  %s5 = inlined_call_operand.hbm [shape: f32[7,16,128], index: 5, kind: output, shape index: {}]
  %s6 = sld [smem:[#allocation0]]
  $region45: #{tpu_custom_call.1} parent=0
    _
  %s8 = ssub.s32 1, %s6
  %s9 = scalar_select 0, %s8, %s6
  %s10 = sshll.u32 %s0, 4
  %s11 = int_to_ptr.vmem [resolvable:$true] %s10
  %13 = dma.vmem_to_smem %s11, 16, [#allocation3], [#allocation2]
  %s14 = sshll.u32 %s1, 4
  %s15 = int_to_ptr.vmem [resolvable:$true] %s14
  %17 = dma.vmem_to_smem %s15, 16, [#allocation4], [#allocation2]
  %18 = dma.done [#allocation2], 32
  %19 = sfence
  $region1: #{tpu_custom_call.1} parent=0
    #allocation5 [shape = 'u8[65536]{0}', space=vmem, size = 0x10000, scoped, tag = 'output window, operand 0']
    #allocation6 [shape = 's32[2]{0}', space=sflag, size = 0x8, scoped, tag = 'scoped memory for tpu_custom_call.1']
    %20 = vsyncpa [#allocation6], 0
    %s21 = scalar_lea.sflag [#allocation6], 1
    %22 = vsyncpa %s21, 0
    loop: start=0, step=1, limit=4
    $region2: #{tpu_custom_call.1} parent=1 // loop_pre_header
      _
    $region3: #{tpu_custom_call.1} parent=1 // loop_header
      %s24 = sphi 0, %s28
      %p25 = scmp.ge.s32.totalorder %s24, 4
      %s32 = sphi 0, %s32
      %s34 = sphi 0, %s32
      %s35 = sphi 0, %s34
      %s49 = sphi 0, %s35
      %s53 = sphi 0, %s53
      %s55 = sphi 0, %s53
      %s56 = sphi 0, %s55
      %s70 = sphi 0, %s56
      %s74 = sphi 0, %s74
      %s76 = sphi 0, %s74
      %s77 = sphi 0, %s76
      %s91 = sphi 0, %s77
      %s97 = sphi 0, %s99
      %s100 = sphi 0, %s97
      %s101 = sphi 0, %s100
      %s117 = sphi 0, %s101
    $region4: #{tpu_custom_call.1} parent=1 // loop_header_branch
      %27 = sbr.rel (%p25) target = $region8
    $region5: #{tpu_custom_call.1} parent=1 // loop_body
      %s29 = ssub.s32 %s24, 1
      %s30 = ssub.s32 %s24, 2
      %s31 = sadd.s32 %s24, 1
      %s33 = sadd.s32 %s32, 1
      %p36 = scmp.eq.s32.totalorder %s24, 1
      %p37 = scmp.ne.s32.totalorder %s32, %s34
      %p38 = scmp.eq.s32.totalorder %s24, 0
      %p39 = por %p37, %p38
      %p40 = scmp.ne.s32.totalorder %s32, %s34
      %p41 = scmp.eq.s32.totalorder %s29, 1
      %p42 = por %p40, %p41
      %p43 = scmp.ne.s32.totalorder %s34, %s35
      %p44 = scmp.eq.s32.totalorder %s29, 0
      %p45 = por %p43, %p44
      %p46 = scmp.ne.s32.totalorder %s34, %s35
      %p47 = scmp.eq.s32.totalorder %s30, 1
      %p48 = por %p46, %p47
      %p50 = scmp.ne.s32.totalorder %s35, %s49
      %p51 = scmp.eq.s32.totalorder %s30, 0
      %p52 = por %p50, %p51
      %s54 = sadd.s32 %s53, 1
      %p57 = scmp.eq.s32.totalorder %s24, 1
      %p58 = scmp.ne.s32.totalorder %s53, %s55
      %p59 = scmp.eq.s32.totalorder %s24, 0
      %p60 = por %p58, %p59
      %p61 = scmp.ne.s32.totalorder %s53, %s55
      %p62 = scmp.eq.s32.totalorder %s29, 1
      %p63 = por %p61, %p62
      %p64 = scmp.ne.s32.totalorder %s55, %s56
      %p65 = scmp.eq.s32.totalorder %s29, 0
      %p66 = por %p64, %p65
      %p67 = scmp.ne.s32.totalorder %s55, %s56
      %p68 = scmp.eq.s32.totalorder %s30, 1
      %p69 = por %p67, %p68
      %p71 = scmp.ne.s32.totalorder %s56, %s70
      %p72 = scmp.eq.s32.totalorder %s30, 0
      %p73 = por %p71, %p72
      %s75 = sadd.s32 %s74, 1
      %p78 = scmp.eq.s32.totalorder %s24, 1
      %p79 = scmp.ne.s32.totalorder %s74, %s76
      %p80 = scmp.eq.s32.totalorder %s24, 0
      %p81 = por %p79, %p80
      %p82 = scmp.ne.s32.totalorder %s74, %s76
      %p83 = scmp.eq.s32.totalorder %s29, 1
      %p84 = por %p82, %p83
      %p85 = scmp.ne.s32.totalorder %s76, %s77
      %p86 = scmp.eq.s32.totalorder %s29, 0
      %p87 = por %p85, %p86
      %p88 = scmp.ne.s32.totalorder %s76, %s77
      %p89 = scmp.eq.s32.totalorder %s30, 1
      %p90 = por %p88, %p89
      %p92 = scmp.ne.s32.totalorder %s77, %s91
      %p93 = scmp.eq.s32.totalorder %s30, 0
      %p94 = por %p92, %p93
      %s95 = ssub.s32 %s24, %s31
      %p96 = scmp.eq.s32.totalorder %s95, 0
      %s98 = sadd.s32 %s97, 1
      %s99 = scalar_select %p96, %s97, %s98
      %p102 = pneg %p96
      %p103 = scmp.eq.s32.totalorder %s24, 1
      %p104 = por %p102, %p103
      %p105 = scmp.ne.s32.totalorder %s97, %s100
      %p106 = scmp.eq.s32.totalorder %s24, 0
      %p107 = por %p105, %p106
      %p108 = scmp.ne.s32.totalorder %s97, %s100
      %p109 = scmp.eq.s32.totalorder %s29, 1
      %p110 = por %p108, %p109
      %p111 = scmp.ne.s32.totalorder %s100, %s101
      %p112 = scmp.eq.s32.totalorder %s29, 0
      %p113 = por %p111, %p112
      %p114 = scmp.ne.s32.totalorder %s100, %s101
      %p115 = scmp.eq.s32.totalorder %s30, 1
      %p116 = por %p114, %p115
      %p118 = scmp.ne.s32.totalorder %s101, %s117
      %p119 = scmp.eq.s32.totalorder %s30, 0
      %p120 = por %p118, %p119
      %p121 = scmp.le.s32.totalorder 1, %s24
      %p122 = scmp.lt.s32.totalorder %s24, 3
      %p123 = pnand %p121, %p122
      %p124 = pneg %p123
      // Predicated region
      $region9: #{tpu_custom_call.1} parent=5 // pred_check
        _
      $region10: #{tpu_custom_call.1} parent=5 // pred_check_branch
        %126 = sbr.rel (%p123) target = $region12
      $region11: #{tpu_custom_call.1} parent=5 // pred_region
        %s127 = ssub.s32 %s24, 1
        // Predicated region
        $region13: #{tpu_custom_call.1} parent=11 // pred_check
          %p128 = pneg %p45
        $region14: #{tpu_custom_call.1} parent=11 // pred_check_branch
          %130 = sbr.rel (%p128) target = $region16
        $region15: #{tpu_custom_call.1} parent=11 // pred_region
          _
        $region16: #{tpu_custom_call.1} parent=11 // pred_fallthru
          _
        // Predicated region
        $region17: #{tpu_custom_call.1} parent=11 // pred_check
          %p131 = pneg %p66
        $region18: #{tpu_custom_call.1} parent=11 // pred_check_branch
          %133 = sbr.rel (%p131) target = $region20
        $region19: #{tpu_custom_call.1} parent=11 // pred_region
          _
        $region20: #{tpu_custom_call.1} parent=11 // pred_fallthru
          _
        // Predicated region
        $region21: #{tpu_custom_call.1} parent=11 // pred_check
          %p134 = pneg %p87
        $region22: #{tpu_custom_call.1} parent=11 // pred_check_branch
          %136 = sbr.rel (%p134) target = $region24
        $region23: #{tpu_custom_call.1} parent=11 // pred_region
          _
        $region24: #{tpu_custom_call.1} parent=11 // pred_fallthru
          _
      $region12: #{tpu_custom_call.1} parent=5 // pred_fallthru
        _
      %p137 = scmp.lt.s32.totalorder %s24, 2
      // Predicated region
      $region25: #{tpu_custom_call.1} parent=5 // pred_check
        %p138 = pneg %p137
      $region26: #{tpu_custom_call.1} parent=5 // pred_check_branch
        %140 = sbr.rel (%p138) target = $region28
      $region27: #{tpu_custom_call.1} parent=5 // pred_region
        _
      $region28: #{tpu_custom_call.1} parent=5 // pred_fallthru
        _
      %p141 = scmp.le.s32.totalorder 1, %s24
      %p142 = scmp.lt.s32.totalorder %s24, 3
      %p143 = pnand %p141, %p142
      %p144 = pneg %p143
      // Predicated region
      $region29: #{tpu_custom_call.1} parent=5 // pred_check
        _
      $region30: #{tpu_custom_call.1} parent=5 // pred_check_branch
        %146 = sbr.rel (%p143) target = $region32
      $region31: #{tpu_custom_call.1} parent=5 // pred_region
        %s147 = ssub.s32 %s24, 1
        %p148 = pneg %p45
        %p149 = pneg %p42
        %p150 = pneg %p66
        %p151 = pneg %p63
        %p152 = pneg %p87
        %p153 = pneg %p84
        %p154 = pneg %p113
        %p155 = pneg %p110
        %s156 = sand.u32 %s100, 1
        %s157 = scalar_lea.sflag [#allocation6], %s156
        %s158 = sand.u32 %s100, 1
        %s159 = smul.addr %s158, 64
        %s160 = scalar_lea.vmem [#allocation5], %s159
        %s161 = smul.u32 4, %s29
        %s162 = ssub.s32 7, %s161
        %p163 = scmp.lt.s32.totalorder %s162, 4
        %s164 = scalar_select %p163, %s162, 4
        %s165 = smul.u32 128, %s164
        %s166 = smul.u32 %s165, 2
        %s167 = smul.u32 %s29, 4
        %v168 = vld [vmem:[%s2] sm:$0x1f]
        %s169 = scalar_lea.vmem %s2, 8
        %v170 = vld [vmem:[%s169] sm:$0x1f]
        %s171 = sld [smem:[#allocation3 + %s167]]
        %p172 = scmp.gt.s32.totalorder %s171, 0
        %s173 = scalar_select %p172, %s171, 0
        %p174 = scmp.lt.s32.totalorder %s173, 9
        %s175 = scalar_select %p174, %s173, 9
        %s176 = sld [smem:[#allocation4 + %s167]]
        %p177 = scmp.ne.s32.totalorder %s176, 0
        %s178 = scalar_select %p177, 1, 0
        %v179 = vstv %s178
        %vm180 = vcmp.eq.s32.totalorder %v179, 1
        %v181 = vsel %vm180, %v170, %v168
        %s182 = smul.u32 %s178, 8
        %s183 = scalar_lea.vmem %s3, %s182
        %v184 = vld [vmem:[%s183] sm:$0x7f]
        %s185 = smul.u32 %s175, 4
        %s186 = scalar_lea.vmem %s4, %s185
        %v187 = vld [vmem:[%s186] sm:$0xf]
        %188 = vst [vmem:[%s160] sm:$0x1f] %v181
        %189 = vst [vmem:[%s160 + $0x5] sm:$0xf] %v187
        %190 = vst [vmem:[%s160 + $0x9] sm:$0x7f] %v184
        %s191 = sadd.s32 %s167, 1
        %s192 = sld [smem:[#allocation3 + %s191]]
        %p193 = scmp.gt.s32.totalorder %s192, 0
        %s194 = scalar_select %p193, %s192, 0
        %p195 = scmp.lt.s32.totalorder %s194, 9
        %s196 = scalar_select %p195, %s194, 9
        %s197 = sld [smem:[#allocation4 + %s191]]
        %p198 = scmp.ne.s32.totalorder %s197, 0
        %s199 = scalar_select %p198, 1, 0
        %v200 = vstv %s199
        %vm201 = vcmp.eq.s32.totalorder %v200, 1
        %v202 = vsel %vm201, %v170, %v168
        %s203 = smul.u32 %s199, 8
        %s204 = scalar_lea.vmem %s3, %s203
        %v205 = vld [vmem:[%s204] sm:$0x7f]
        %s206 = smul.u32 %s196, 4
        %s207 = scalar_lea.vmem %s4, %s206
        %v208 = vld [vmem:[%s207] sm:$0xf]
        %s209 = scalar_lea.vmem %s160, 16 [#allocation5]
        %210 = vst [vmem:[%s209] sm:$0x1f] %v202
        %211 = vst [vmem:[%s209 + $0x5] sm:$0xf] %v208
        %212 = vst [vmem:[%s209 + $0x9] sm:$0x7f] %v205
        %s213 = sadd.s32 %s167, 2
        %s214 = sld [smem:[#allocation3 + %s213]]
        %p215 = scmp.gt.s32.totalorder %s214, 0
        %s216 = scalar_select %p215, %s214, 0
        %p217 = scmp.lt.s32.totalorder %s216, 9
        %s218 = scalar_select %p217, %s216, 9
        %s219 = sld [smem:[#allocation4 + %s213]]
        %p220 = scmp.ne.s32.totalorder %s219, 0
        %s221 = scalar_select %p220, 1, 0
        %v222 = vstv %s221
        %vm223 = vcmp.eq.s32.totalorder %v222, 1
        %v224 = vsel %vm223, %v170, %v168
        %s225 = smul.u32 %s221, 8
        %s226 = scalar_lea.vmem %s3, %s225
        %v227 = vld [vmem:[%s226] sm:$0x7f]
        %s228 = smul.u32 %s218, 4
        %s229 = scalar_lea.vmem %s4, %s228
        %v230 = vld [vmem:[%s229] sm:$0xf]
        %s231 = scalar_lea.vmem %s160, 32 [#allocation5]
        %232 = vst [vmem:[%s231] sm:$0x1f] %v224
        %233 = vst [vmem:[%s231 + $0x5] sm:$0xf] %v230
        %234 = vst [vmem:[%s231 + $0x9] sm:$0x7f] %v227
        %s235 = sadd.s32 %s167, 3
        %s236 = sld [smem:[#allocation3 + %s235]]
        %p237 = scmp.gt.s32.totalorder %s236, 0
        %s238 = scalar_select %p237, %s236, 0
        %p239 = scmp.lt.s32.totalorder %s238, 9
        %s240 = scalar_select %p239, %s238, 9
        %s241 = sld [smem:[#allocation4 + %s235]]
        %p242 = scmp.ne.s32.totalorder %s241, 0
        %s243 = scalar_select %p242, 1, 0
        %v244 = vstv %s243
        %vm245 = vcmp.eq.s32.totalorder %v244, 1
        %v246 = vsel %vm245, %v170, %v168
        %s247 = smul.u32 %s243, 8
        %s248 = scalar_lea.vmem %s3, %s247
        %v249 = vld [vmem:[%s248] sm:$0x7f]
        %s250 = smul.u32 %s240, 4
        %s251 = scalar_lea.vmem %s4, %s250
        %v252 = vld [vmem:[%s251] sm:$0xf]
        %s253 = scalar_lea.vmem %s160, 48 [#allocation5]
        %254 = vst [vmem:[%s253] sm:$0x1f] %v246
        %255 = vst [vmem:[%s253 + $0x5] sm:$0xf] %v252
        %256 = vst [vmem:[%s253 + $0x9] sm:$0x7f] %v249
        %s257 = sand.u32 %s100, 1
        %s258 = scalar_lea.sflag [#allocation6], %s257
        %s259 = sand.u32 %s100, 1
        %s260 = smul.addr %s259, 64
        %s261 = scalar_lea.vmem [#allocation5], %s260
        // Predicated region
        $region33: #{tpu_custom_call.1} parent=31 // pred_check
          %p262 = pneg %p110
        $region34: #{tpu_custom_call.1} parent=31 // pred_check_branch
          %264 = sbr.rel (%p262) target = $region36
        $region35: #{tpu_custom_call.1} parent=31 // pred_region
          %s265 = smul.u32 4, %s29
          %s266 = ssub.s32 7, %s265
          %p267 = scmp.lt.s32.totalorder %s266, 4
          %s268 = scalar_select %p267, %s266, 4
          %s269 = smul.u32 128, %s268
          %s270 = smul.u32 %s269, 2
          %s272 = ssub.s32 1024, %s270
          %273 = vsyncadd %s258, %s272
          %p274 = scmp.ne.s32.totalorder 0, %s270
          %s275 = smul.addr %s265, 2
          %s276 = smul.addr %s275, 128
          %s277 = scalar_lea.hbm %s5, %s276
          %s278 = smul.u32 %s268, 2
          %s279 = smul.u32 8, %s278
          %s280 = sshll.u32 %s261, 4
          %s281 = int_to_ptr.vmem [resolvable:$true] %s280
          %s282 = sshll.u32 %s279, 4
          %286 = dma.vmem_to_hbm [thread:$0]  (%p274), %s281, %s282, %s277, %s258, 128, 128, 8
        $region36: #{tpu_custom_call.1} parent=31 // pred_fallthru
          _
      $region32: #{tpu_custom_call.1} parent=5 // pred_fallthru
        _
      %p287 = scmp.le.s32.totalorder 2, %s24
      // Predicated region
      $region37: #{tpu_custom_call.1} parent=5 // pred_check
        %p288 = pneg %p287
      $region38: #{tpu_custom_call.1} parent=5 // pred_check_branch
        %290 = sbr.rel (%p288) target = $region40
      $region39: #{tpu_custom_call.1} parent=5 // pred_region
        %s291 = ssub.s32 %s24, 2
        // Predicated region
        $region41: #{tpu_custom_call.1} parent=39 // pred_check
          %p292 = pneg %p116
        $region42: #{tpu_custom_call.1} parent=39 // pred_check_branch
          %294 = sbr.rel (%p292) target = $region44
        $region43: #{tpu_custom_call.1} parent=39 // pred_region
          %s295 = sand.u32 %s101, 1
          %s296 = scalar_lea.sflag [#allocation6], %s295
          %s297 = sand.u32 %s101, 1
          %s298 = smul.addr %s297, 64
          %s299 = scalar_lea.vmem [#allocation5], %s298
          %300 = dma.done %s296, 1024
        $region44: #{tpu_custom_call.1} parent=39 // pred_fallthru
          _
      $region40: #{tpu_custom_call.1} parent=5 // pred_fallthru
        _
    $region6: #{tpu_custom_call.1} parent=1 // loop_footer
      %s28 = sadd.s32 1, %s24
    $region7: #{tpu_custom_call.1} parent=1 // loop_footer_branch
      %23 = sbr.rel target = $region3
    $region8: #{tpu_custom_call.1} parent=1 // loop_exit
      _
    %301 = vsyncpa [#allocation6], 1
    %s302 = scalar_lea.sflag [#allocation6], 1
    %303 = vsyncpa %s302, 1

// kernel: tpu_custom_call.1
$region0: #{tpu_custom_call.1}
  #allocation0 [shape = 'u32[]', space=smem, size = 0x4, offset = 0x4, fixed_abs, tag = 'smem constant byte address 0x4 - core index']
  #allocation1 [shape = 'u32[144,128]{1,0:T(1,128)}', space=vmem, size = 0x12000, scoped, tag = 'internal scratch']
  #allocation2 [shape = 's32[1]{0}', space=sflag, size = 0x4, scoped, tag = 'scoped memory for tpu_custom_call.1']
  #allocation3 [shape = 'u8[512]{0}', space=smem, size = 0x200, scoped, tag = 'prefetched SMEM operand 0']
  #allocation4 [shape = 'u8[512]{0}', space=smem, size = 0x200, scoped, tag = 'prefetched SMEM operand 1']
  %s0 = inlined_call_operand.vmem [shape: s32[8], index: 0, kind: input, shape index: {}]
  %s1 = inlined_call_operand.vmem [shape: s32[8], index: 1, kind: input, shape index: {}]
  %s2 = inlined_call_operand.vmem [shape: f32[2,5,128], index: 2, kind: input, shape index: {}]
  %s3 = inlined_call_operand.vmem [shape: f32[2,7,128], index: 3, kind: input, shape index: {}]
  %s4 = inlined_call_operand.vmem [shape: f32[10,4,128], index: 4, kind: input, shape index: {}]
  %s5 = inlined_call_operand.hbm [shape: f32[7,16,128], index: 5, kind: output, shape index: {}]
  %s6 = sld [smem:[#allocation0]]
  $region45: #{tpu_custom_call.1} parent=0
    _
  %s8 = ssub.s32 1, %s6
  %s9 = scalar_select 0, %s8, %s6
  %s10 = sshll.u32 %s0, 4
  %s11 = int_to_ptr.vmem [resolvable:$true] %s10
  %13 = dma.vmem_to_smem %s11, 16, [#allocation3], [#allocation2]
  %s14 = sshll.u32 %s1, 4
  %s15 = int_to_ptr.vmem [resolvable:$true] %s14
  %17 = dma.vmem_to_smem %s15, 16, [#allocation4], [#allocation2]
  %18 = dma.done [#allocation2], 32
  %19 = sfence
  $region1: #{tpu_custom_call.1} parent=0
    #allocation5 [shape = 'u8[65536]{0}', space=vmem, size = 0x10000, scoped, tag = 'output window, operand 0']
    #allocation6 [shape = 's32[2]{0}', space=sflag, size = 0x8, scoped, tag = 'scoped memory for tpu_custom_call.1']
    %20 = vsyncpa [#allocation6], 0
    %s21 = scalar_lea.sflag [#allocation6], 1
    %22 = vsyncpa %s21, 0
    loop: start=0, step=1, limit=4
    $region2: #{tpu_custom_call.1} parent=1 // loop_pre_header
      _
    $region3: #{tpu_custom_call.1} parent=1 // loop_header
      %s24 = sphi 0, %s28
      %p25 = scmp.ge.s32.totalorder %s24, 4
      %s32 = sphi 0, %s32
      %s34 = sphi 0, %s32
      %s35 = sphi 0, %s34
      %s49 = sphi 0, %s35
      %s53 = sphi 0, %s53
      %s55 = sphi 0, %s53
      %s56 = sphi 0, %s55
      %s70 = sphi 0, %s56
      %s74 = sphi 0, %s74
      %s76 = sphi 0, %s74
      %s77 = sphi 0, %s76
      %s91 = sphi 0, %s77
      %s97 = sphi 0, %s99
      %s100 = sphi 0, %s97
      %s101 = sphi 0, %s100
      %s117 = sphi 0, %s101
    $region4: #{tpu_custom_call.1} parent=1 // loop_header_branch
      %27 = sbr.rel (%p25) target = $region8
    $region5: #{tpu_custom_call.1} parent=1 // loop_body
      %s29 = ssub.s32 %s24, 1
      %s30 = ssub.s32 %s24, 2
      %s31 = sadd.s32 %s24, 1
      %s33 = sadd.s32 %s32, 1
      %p36 = scmp.eq.s32.totalorder %s24, 1
      %p37 = scmp.ne.s32.totalorder %s32, %s34
      %p38 = scmp.eq.s32.totalorder %s24, 0
      %p39 = por %p37, %p38
      %p40 = scmp.ne.s32.totalorder %s32, %s34
      %p41 = scmp.eq.s32.totalorder %s29, 1
      %p42 = por %p40, %p41
      %p43 = scmp.ne.s32.totalorder %s34, %s35
      %p44 = scmp.eq.s32.totalorder %s29, 0
      %p45 = por %p43, %p44
      %p46 = scmp.ne.s32.totalorder %s34, %s35
      %p47 = scmp.eq.s32.totalorder %s30, 1
      %p48 = por %p46, %p47
      %p50 = scmp.ne.s32.totalorder %s35, %s49
      %p51 = scmp.eq.s32.totalorder %s30, 0
      %p52 = por %p50, %p51
      %s54 = sadd.s32 %s53, 1
      %p57 = scmp.eq.s32.totalorder %s24, 1
      %p58 = scmp.ne.s32.totalorder %s53, %s55
      %p59 = scmp.eq.s32.totalorder %s24, 0
      %p60 = por %p58, %p59
      %p61 = scmp.ne.s32.totalorder %s53, %s55
      %p62 = scmp.eq.s32.totalorder %s29, 1
      %p63 = por %p61, %p62
      %p64 = scmp.ne.s32.totalorder %s55, %s56
      %p65 = scmp.eq.s32.totalorder %s29, 0
      %p66 = por %p64, %p65
      %p67 = scmp.ne.s32.totalorder %s55, %s56
      %p68 = scmp.eq.s32.totalorder %s30, 1
      %p69 = por %p67, %p68
      %p71 = scmp.ne.s32.totalorder %s56, %s70
      %p72 = scmp.eq.s32.totalorder %s30, 0
      %p73 = por %p71, %p72
      %s75 = sadd.s32 %s74, 1
      %p78 = scmp.eq.s32.totalorder %s24, 1
      %p79 = scmp.ne.s32.totalorder %s74, %s76
      %p80 = scmp.eq.s32.totalorder %s24, 0
      %p81 = por %p79, %p80
      %p82 = scmp.ne.s32.totalorder %s74, %s76
      %p83 = scmp.eq.s32.totalorder %s29, 1
      %p84 = por %p82, %p83
      %p85 = scmp.ne.s32.totalorder %s76, %s77
      %p86 = scmp.eq.s32.totalorder %s29, 0
      %p87 = por %p85, %p86
      %p88 = scmp.ne.s32.totalorder %s76, %s77
      %p89 = scmp.eq.s32.totalorder %s30, 1
      %p90 = por %p88, %p89
      %p92 = scmp.ne.s32.totalorder %s77, %s91
      %p93 = scmp.eq.s32.totalorder %s30, 0
      %p94 = por %p92, %p93
      %s95 = ssub.s32 %s24, %s31
      %p96 = scmp.eq.s32.totalorder %s95, 0
      %s98 = sadd.s32 %s97, 1
      %s99 = scalar_select %p96, %s97, %s98
      %p102 = pneg %p96
      %p103 = scmp.eq.s32.totalorder %s24, 1
      %p104 = por %p102, %p103
      %p105 = scmp.ne.s32.totalorder %s97, %s100
      %p106 = scmp.eq.s32.totalorder %s24, 0
      %p107 = por %p105, %p106
      %p108 = scmp.ne.s32.totalorder %s97, %s100
      %p109 = scmp.eq.s32.totalorder %s29, 1
      %p110 = por %p108, %p109
      %p111 = scmp.ne.s32.totalorder %s100, %s101
      %p112 = scmp.eq.s32.totalorder %s29, 0
      %p113 = por %p111, %p112
      %p114 = scmp.ne.s32.totalorder %s100, %s101
      %p115 = scmp.eq.s32.totalorder %s30, 1
      %p116 = por %p114, %p115
      %p118 = scmp.ne.s32.totalorder %s101, %s117
      %p119 = scmp.eq.s32.totalorder %s30, 0
      %p120 = por %p118, %p119
      %p121 = scmp.le.s32.totalorder 1, %s24
      %p122 = scmp.lt.s32.totalorder %s24, 3
      %p123 = pnand %p121, %p122
      %p124 = pneg %p123
      // Predicated region
      $region9: #{tpu_custom_call.1} parent=5 // pred_check
        _
      $region10: #{tpu_custom_call.1} parent=5 // pred_check_branch
        %126 = sbr.rel (%p123) target = $region12
      $region11: #{tpu_custom_call.1} parent=5 // pred_region
        %s127 = ssub.s32 %s24, 1
        // Predicated region
        $region13: #{tpu_custom_call.1} parent=11 // pred_check
          %p128 = pneg %p45
        $region14: #{tpu_custom_call.1} parent=11 // pred_check_branch
          %130 = sbr.rel (%p128) target = $region16
        $region15: #{tpu_custom_call.1} parent=11 // pred_region
          _
        $region16: #{tpu_custom_call.1} parent=11 // pred_fallthru
          _
        // Predicated region
        $region17: #{tpu_custom_call.1} parent=11 // pred_check
          %p131 = pneg %p66
        $region18: #{tpu_custom_call.1} parent=11 // pred_check_branch
          %133 = sbr.rel (%p131) target = $region20
        $region19: #{tpu_custom_call.1} parent=11 // pred_region
          _
        $region20: #{tpu_custom_call.1} parent=11 // pred_fallthru
          _
        // Predicated region
        $region21: #{tpu_custom_call.1} parent=11 // pred_check
          %p134 = pneg %p87
        $region22: #{tpu_custom_call.1} parent=11 // pred_check_branch
          %136 = sbr.rel (%p134) target = $region24
        $region23: #{tpu_custom_call.1} parent=11 // pred_region
          _
        $region24: #{tpu_custom_call.1} parent=11 // pred_fallthru
          _
      $region12: #{tpu_custom_call.1} parent=5 // pred_fallthru
        _
      %p137 = scmp.lt.s32.totalorder %s24, 2
      // Predicated region
      $region25: #{tpu_custom_call.1} parent=5 // pred_check
        %p138 = pneg %p137
      $region26: #{tpu_custom_call.1} parent=5 // pred_check_branch
        %140 = sbr.rel (%p138) target = $region28
      $region27: #{tpu_custom_call.1} parent=5 // pred_region
        _
      $region28: #{tpu_custom_call.1} parent=5 // pred_fallthru
        _
      %p141 = scmp.le.s32.totalorder 1, %s24
      %p142 = scmp.lt.s32.totalorder %s24, 3
      %p143 = pnand %p141, %p142
      %p144 = pneg %p143
      // Predicated region
      $region29: #{tpu_custom_call.1} parent=5 // pred_check
        _
      $region30: #{tpu_custom_call.1} parent=5 // pred_check_branch
        %146 = sbr.rel (%p143) target = $region32
      $region31: #{tpu_custom_call.1} parent=5 // pred_region
        %s147 = ssub.s32 %s24, 1
        %p148 = pneg %p45
        %p149 = pneg %p42
        %p150 = pneg %p66
        %p151 = pneg %p63
        %p152 = pneg %p87
        %p153 = pneg %p84
        %p154 = pneg %p113
        %p155 = pneg %p110
        %s156 = sand.u32 %s100, 1
        %s157 = scalar_lea.sflag [#allocation6], %s156
        %s158 = sand.u32 %s100, 1
        %s159 = smul.addr %s158, 64
        %s160 = scalar_lea.vmem [#allocation5], %s159
        %s161 = smul.u32 4, %s29
        %s162 = ssub.s32 7, %s161
        %p163 = scmp.lt.s32.totalorder %s162, 4
        %s164 = scalar_select %p163, %s162, 4
        %s165 = smul.u32 128, %s164
        %s166 = smul.u32 %s165, 2
        %s167 = smul.u32 %s29, 4
        %v168 = vld [vmem:[%s2] sm:$0x1f]
        %s169 = scalar_lea.vmem %s2, 8
        %v170 = vld [vmem:[%s169] sm:$0x1f]
        %s171 = sld [smem:[#allocation3 + %s167]]
        %p172 = scmp.gt.s32.totalorder %s171, 0
        %s173 = scalar_select %p172, %s171, 0
        %p174 = scmp.lt.s32.totalorder %s173, 9
        %s175 = scalar_select %p174, %s173, 9
        %s176 = sld [smem:[#allocation4 + %s167]]
        %p177 = scmp.ne.s32.totalorder %s176, 0
        %s178 = scalar_select %p177, 1, 0
        %v179 = vstv %s178
        %vm180 = vcmp.eq.s32.totalorder %v179, 1
        %v181 = vsel %vm180, %v170, %v168
        %s182 = smul.u32 %s178, 8
        %s183 = scalar_lea.vmem %s3, %s182
        %v184 = vld [vmem:[%s183] sm:$0x7f]
        %s185 = smul.u32 %s175, 4
        %s186 = scalar_lea.vmem %s4, %s185
        %v187 = vld [vmem:[%s186] sm:$0xf]
        %188 = vst [vmem:[%s160] sm:$0x1f] %v181
        %189 = vst [vmem:[%s160 + $0x5] sm:$0xf] %v187
        %190 = vst [vmem:[%s160 + $0x9] sm:$0x7f] %v184
        %s191 = sadd.s32 %s167, 1
        %s192 = sld [smem:[#allocation3 + %s191]]
        %p193 = scmp.gt.s32.totalorder %s192, 0
        %s194 = scalar_select %p193, %s192, 0
        %p195 = scmp.lt.s32.totalorder %s194, 9
        %s196 = scalar_select %p195, %s194, 9
        %s197 = sld [smem:[#allocation4 + %s191]]
        %p198 = scmp.ne.s32.totalorder %s197, 0
        %s199 = scalar_select %p198, 1, 0
        %v200 = vstv %s199
        %vm201 = vcmp.eq.s32.totalorder %v200, 1
        %v202 = vsel %vm201, %v170, %v168
        %s203 = smul.u32 %s199, 8
        %s204 = scalar_lea.vmem %s3, %s203
        %v205 = vld [vmem:[%s204] sm:$0x7f]
        %s206 = smul.u32 %s196, 4
        %s207 = scalar_lea.vmem %s4, %s206
        %v208 = vld [vmem:[%s207] sm:$0xf]
        %s209 = scalar_lea.vmem %s160, 16 [#allocation5]
        %210 = vst [vmem:[%s209] sm:$0x1f] %v202
        %211 = vst [vmem:[%s209 + $0x5] sm:$0xf] %v208
        %212 = vst [vmem:[%s209 + $0x9] sm:$0x7f] %v205
        %s213 = sadd.s32 %s167, 2
        %s214 = sld [smem:[#allocation3 + %s213]]
        %p215 = scmp.gt.s32.totalorder %s214, 0
        %s216 = scalar_select %p215, %s214, 0
        %p217 = scmp.lt.s32.totalorder %s216, 9
        %s218 = scalar_select %p217, %s216, 9
        %s219 = sld [smem:[#allocation4 + %s213]]
        %p220 = scmp.ne.s32.totalorder %s219, 0
        %s221 = scalar_select %p220, 1, 0
        %v222 = vstv %s221
        %vm223 = vcmp.eq.s32.totalorder %v222, 1
        %v224 = vsel %vm223, %v170, %v168
        %s225 = smul.u32 %s221, 8
        %s226 = scalar_lea.vmem %s3, %s225
        %v227 = vld [vmem:[%s226] sm:$0x7f]
        %s228 = smul.u32 %s218, 4
        %s229 = scalar_lea.vmem %s4, %s228
        %v230 = vld [vmem:[%s229] sm:$0xf]
        %s231 = scalar_lea.vmem %s160, 32 [#allocation5]
        %232 = vst [vmem:[%s231] sm:$0x1f] %v224
        %233 = vst [vmem:[%s231 + $0x5] sm:$0xf] %v230
        %234 = vst [vmem:[%s231 + $0x9] sm:$0x7f] %v227
        %s235 = sadd.s32 %s167, 3
        %s236 = sld [smem:[#allocation3 + %s235]]
        %p237 = scmp.gt.s32.totalorder %s236, 0
        %s238 = scalar_select %p237, %s236, 0
        %p239 = scmp.lt.s32.totalorder %s238, 9
        %s240 = scalar_select %p239, %s238, 9
        %s241 = sld [smem:[#allocation4 + %s235]]
        %p242 = scmp.ne.s32.totalorder %s241, 0
        %s243 = scalar_select %p242, 1, 0
        %v244 = vstv %s243
        %vm245 = vcmp.eq.s32.totalorder %v244, 1
        %v246 = vsel %vm245, %v170, %v168
        %s247 = smul.u32 %s243, 8
        %s248 = scalar_lea.vmem %s3, %s247
        %v249 = vld [vmem:[%s248] sm:$0x7f]
        %s250 = smul.u32 %s240, 4
        %s251 = scalar_lea.vmem %s4, %s250
        %v252 = vld [vmem:[%s251] sm:$0xf]
        %s253 = scalar_lea.vmem %s160, 48 [#allocation5]
        %254 = vst [vmem:[%s253] sm:$0x1f] %v246
        %255 = vst [vmem:[%s253 + $0x5] sm:$0xf] %v252
        %256 = vst [vmem:[%s253 + $0x9] sm:$0x7f] %v249
        %s257 = sand.u32 %s100, 1
        %s258 = scalar_lea.sflag [#allocation6], %s257
        %s259 = sand.u32 %s100, 1
        %s260 = smul.addr %s259, 64
        %s261 = scalar_lea.vmem [#allocation5], %s260
        // Predicated region
        $region33: #{tpu_custom_call.1} parent=31 // pred_check
          %p262 = pneg %p110
        $region34: #{tpu_custom_call.1} parent=31 // pred_check_branch
          %264 = sbr.rel (%p262) target = $region36
        $region35: #{tpu_custom_call.1} parent=31 // pred_region
          %s265 = smul.u32 4, %s29
          %s266 = ssub.s32 7, %s265
          %p267 = scmp.lt.s32.totalorder %s266, 4
          %s268 = scalar_select %p267, %s266, 4
          %s269 = smul.u32 128, %s268
          %s270 = smul.u32 %s269, 2
          %s272 = ssub.s32 1024, %s270
          %273 = vsyncadd %s258, %s272
          %p274 = scmp.ne.s32.totalorder 0, %s270
          %s275 = smul.addr %s265, 2
          %s276 = smul.addr %s275, 128
          %s277 = scalar_lea.hbm %s5, %s276
          %s278 = smul.u32 %s268, 2
          %s279 = smul.u32 8, %s278
          %s280 = sshll.u32 %s261, 4
          %s281 = int_to_ptr.vmem [resolvable:$true] %s280
          %s282 = sshll.u32 %s279, 4
          %286 = dma.vmem_to_hbm [thread:$0]  (%p274), %s281, %s282, %s277, %s258, 128, 128, 8
        $region36: #{tpu_custom_call.1} parent=31 // pred_fallthru
          _
      $region32: #{tpu_custom_call.1} parent=5 // pred_fallthru
        _
      %p287 = scmp.le.s32.totalorder 2, %s24
      // Predicated region
      $region37: #{tpu_custom_call.1} parent=5 // pred_check
        %p288 = pneg %p287
      $region38: #{tpu_custom_call.1} parent=5 // pred_check_branch
        %290 = sbr.rel (%p288) target = $region40
      $region39: #{tpu_custom_call.1} parent=5 // pred_region
        %s291 = ssub.s32 %s24, 2
        // Predicated region
        $region41: #{tpu_custom_call.1} parent=39 // pred_check
          %p292 = pneg %p116
        $region42: #{tpu_custom_call.1} parent=39 // pred_check_branch
          %294 = sbr.rel (%p292) target = $region44
        $region43: #{tpu_custom_call.1} parent=39 // pred_region
          %s295 = sand.u32 %s101, 1
          %s296 = scalar_lea.sflag [#allocation6], %s295
          %s297 = sand.u32 %s101, 1
          %s298 = smul.addr %s297, 64
          %s299 = scalar_lea.vmem [#allocation5], %s298
          %300 = dma.done %s296, 1024
        $region44: #{tpu_custom_call.1} parent=39 // pred_fallthru
          _
      $region40: #{tpu_custom_call.1} parent=5 // pred_fallthru
        _
    $region6: #{tpu_custom_call.1} parent=1 // loop_footer
      %s28 = sadd.s32 1, %s24
    $region7: #{tpu_custom_call.1} parent=1 // loop_footer_branch
      %23 = sbr.rel target = $region3
    $region8: #{tpu_custom_call.1} parent=1 // loop_exit
      _
    %301 = vsyncpa [#allocation6], 1
    %s302 = scalar_lea.sflag [#allocation6], 1
    %303 = vsyncpa %s302, 1

</llo_original>
